<compile_context>
chip_gen: v5e
topology: v5e:2x2
jax: 0.10.0
libtpu: 0.0.40
codegen_flags: <defaults>
</compile_context>

<pallas_src>
import functools

import jax
import jax.numpy as jnp
from jax.experimental import pallas as pl
from jax.experimental.pallas import tpu as pltpu


def _round_up(x, m):
    return ((x + m - 1) // m) * m


# ----------------------------------------------------------------------------
# Fused kernel: embed_vp (Linear VP->E) + LayerNorm(E) + head (E->VP_PAD) + MSE partials
# ----------------------------------------------------------------------------
def fused_pipeline_kernel(
    x_ref,      # (tile_r, VP)     f32  — future rows (also the MSE ground truth)
    we_ref,     # (VP, E)          bf16 — embed_vp weight (resident)
    be_ref,     # (1, E)           f32  — embed_vp bias
    wh_ref,     # (E, VP_PAD)      bf16 — head weight with LN gamma folded in (pad cols 0)
    bh_ref,     # (1, VP_PAD)      f32  — head bias with LN beta folded in (pad lanes 0)
    pred_ref,   # (tile_r, VP_PAD) bf16 out — logits, lane-dense stores
    ssq_ref,    # (8, VP)          f32  out — per-lane squared-error partial sums (tile i)
    *,
    vp,
    num_rows,
    tile_r,
    needs_mask,
):
    x = x_ref[...]                                                    # f32 (tile_r, VP)

    # embed_vp: x @ We + be   (bf16 operands, f32 accumulation on the MXU)
    y = jnp.dot(x.astype(jnp.bfloat16), we_ref[...],
                preferred_element_type=jnp.float32) + be_ref[...]

    # embed_ln: normalize over E in f32 (biased variance, eps=1e-5 — matches torch).
    # The affine (gamma/beta) is folded into wh/bh in the wrapper.
    mean = jnp.mean(y, axis=-1, keepdims=True)
    var = jnp.mean(jnp.square(y - mean), axis=-1, keepdims=True)
    norm = (y - mean) * jax.lax.rsqrt(var + 1e-5)

    # networking-head stand-in: norm @ (gamma*Wh) + (beta@Wh + bh)
    pred = jnp.dot(norm.astype(jnp.bfloat16), wh_ref[...],
                   preferred_element_type=jnp.float32) + bh_ref[...]
    pred_ref[...] = pred.astype(pred_ref.dtype)                       # bf16 writeback

    # MSE partial sums over the valid VP lanes.  gt == x for the tail positions
    # (teacher forcing: the last F positions of concat(history, future) are `future`).
    d = pred[:, :vp] - x                                              # f32 (tile_r, VP)
    if needs_mask:  # static: only emitted when R % tile_r != 0
        row_ids = (pl.program_id(0) * tile_r
                   + jax.lax.broadcasted_iota(jnp.int32, (tile_r, 1), 0))
        d = jnp.where(row_ids < num_rows, d, 0.0)
    partial = jnp.sum(d * d, axis=0, keepdims=True)                   # (1, VP) per-lane
    ssq_ref[...] = jnp.broadcast_to(partial, (8, vp))                 # (8, VP) block


# ----------------------------------------------------------------------------
# One-time parameter preparation (fold LN affine into head, pad, cast to bf16)
# ----------------------------------------------------------------------------
def prepare_params(params):
    vp, e = params["embed_vp_w"].shape
    assert e % 128 == 0, "embed_size should be a multiple of 128 for lane-dense tiles"
    vp_pad = _round_up(vp, 128)          # 100 -> 128

    we = params["embed_vp_w"].astype(jnp.bfloat16)                    # (VP, E)
    be = params["embed_vp_b"].reshape(1, e).astype(jnp.float32)

    # Fold LayerNorm affine into the head, in f32 BEFORE the bf16 cast (exact algebra):
    #   emb @ Wh + bh = norm @ (gamma[:,None]*Wh) + (beta @ Wh + bh)
    wh_f = params["ln_gamma"][:, None].astype(jnp.float32) * params["head_w"].astype(jnp.float32)
    bh_f = params["ln_beta"].astype(jnp.float32) @ params["head_w"].astype(jnp.float32) \
        + params["head_b"].astype(jnp.float32)
    wh = jnp.zeros((e, vp_pad), jnp.float32).at[:, :vp].set(wh_f).astype(jnp.bfloat16)
    bh = jnp.zeros((1, vp_pad), jnp.float32).at[0, :vp].set(bh_f)

    return {"we": we, "be": be, "wh": wh, "bh": bh,
            "vp": vp, "vp_pad": vp_pad, "embed": e}


# ----------------------------------------------------------------------------
# Pipeline forward (teacher-forcing branch)
# ----------------------------------------------------------------------------
def pipeline_forward(prepared, batch, future, tile_r=None):
    """
    batch:  (B, H, 100)   history viewport trajectory
    future: (B, F, 100)   future viewport trajectory (ground truth)
    returns (scalar MSE loss, pred (B, F, 100)) — matches Pipeline.forward(teacher_forcing=True)
    """
    B, H, VP = batch.shape
    F = future.shape[1]
    assert VP == prepared["vp"]
    E = prepared["embed"]
    VP_PAD = prepared["vp_pad"]

    # Only the last F (future) positions feed the head: with the plm body stubbed as
    # identity, embedding the history rows is dead compute.
    R = B * F
    if tile_r is None:
        tile_r = 512 if R >= 512 else _round_up(R, 8)
    assert tile_r % 8 == 0
    grid_r = pl.cdiv(R, tile_r)
    needs_mask = (R % tile_r) != 0

    x2d = future.reshape(R, VP).astype(jnp.float32)   # no pad pass: lane dim = full dim

    kernel = functools.partial(
        fused_pipeline_kernel,
        vp=VP, num_rows=R, tile_r=tile_r, needs_mask=needs_mask)

    grid_spec = pltpu.PrefetchScalarGridSpec(
        num_scalar_prefetch=0,
        grid=(grid_r,),
        in_specs=[
            pl.BlockSpec((tile_r, VP), lambda i: (i, 0)),       # x / gt row tiles
            pl.BlockSpec((VP, E), lambda i: (0, 0)),            # embed W (resident)
            pl.BlockSpec((1, E), lambda i: (0, 0)),             # embed bias
            pl.BlockSpec((E, VP_PAD), lambda i: (0, 0)),        # head W (LN-folded, resident)
            pl.BlockSpec((1, VP_PAD), lambda i: (0, 0)),        # head bias (LN-folded)
        ],
        out_specs=(
            pl.BlockSpec((tile_r, VP_PAD), lambda i: (i, 0)),   # pred tiles (lane-dense bf16)
            pl.BlockSpec((None, 8, VP), lambda i: (i, 0, 0)),   # per-tile SSQ partials
        ),
    )

    pred_pad, ssq_parts = pl.pallas_call(
        kernel,
        out_shape=(
            jax.ShapeDtypeStruct((R, VP_PAD), jnp.bfloat16),
            jax.ShapeDtypeStruct((grid_r, 8, VP), jnp.float32),
        ),
        grid_spec=grid_spec,
        compiler_params=pltpu.CompilerParams(
            dimension_semantics=("parallel",),        # no cross-tile carry -> megacore OK
            vmem_limit_bytes=48 * 1024 * 1024,        # explicit budget; < v7x 64 MiB VMEM
        ),
    )(x2d, prepared["we"], prepared["be"], prepared["wh"], prepared["bh"])

    # Downstream consumers could keep the padded bf16 (R, 128) layout; the original module
    # contract returns (B, F, 100), so slice/reshape here (bf16 halves this pass).
    pred = pred_pad[:, :VP].reshape(B, F, VP)
    loss = ssq_parts[:, 0, :].sum() / (R * VP)        # real element count (pad masked out)
    return loss, pred


# ----------------------------------------------------------------------------
# Pure-JAX reference (f32, unfused LayerNorm) for sanity checking
# ----------------------------------------------------------------------------
def _reference_forward(params, batch, future):
    B, F, VP = future.shape
    x = future.reshape(B * F, VP).astype(jnp.float32)
    y = x @ params["embed_vp_w"] + params["embed_vp_b"]
    mean = y.mean(-1, keepdims=True)
    var = ((y - mean) ** 2).mean(-1, keepdims=True)
    emb = (y - mean) * jax.lax.rsqrt(var + 1e-5) * params["ln_gamma"] + params["ln_beta"]
    pred = emb @ params["head_w"] + params["head_b"]
    loss = jnp.mean((pred - x) ** 2)
    return loss, pred.reshape(B, F, VP)


def init_params(key, vp_dim=100, embed_size=256):
    k1, k2, k3, k4 = jax.random.split(key, 4)
    scale_in = 1.0 / jnp.sqrt(vp_dim)
    scale_e = 1.0 / jnp.sqrt(embed_size)
    return {
        # embed_vp: nn.Linear(100, embed_size)
        "embed_vp_w": jax.random.uniform(k1, (vp_dim, embed_size), jnp.float32,
                                         -scale_in, scale_in),
        "embed_vp_b": jax.random.uniform(k2, (embed_size,), jnp.float32,
                                         -scale_in, scale_in),
        # embed_ln: nn.LayerNorm(embed_size) default init
        "ln_gamma": jnp.ones((embed_size,), jnp.float32),
        "ln_beta": jnp.zeros((embed_size,), jnp.float32),
        # networking-head stand-in: Linear(embed_size, 100)
        "head_w": jax.random.uniform(k3, (embed_size, vp_dim), jnp.float32,
                                     -scale_e, scale_e),
        "head_b": jax.random.uniform(k4, (vp_dim,), jnp.float32,
                                     -scale_e, scale_e),
    }


if __name__ == "__main__":
    key = jax.random.PRNGKey(0)
    kp, kx, kf = jax.random.split(key, 3)

    B, HIST, FUT, VP = 2, 8, 8, 100    # small shapes; viewport feature dim fixed at 100
    EMBED = 256                         # small stand-in for embed_size=1024 (lane-aligned)

    params = init_params(kp, vp_dim=VP, embed_size=EMBED)
    batch = jax.random.normal(kx, (B, HIST, VP), jnp.float32)
    future = jax.random.normal(kf, (B, FUT, VP), jnp.float32)

    prepared = prepare_params(params)   # one-time: LN fold + pad + bf16 cast

    # tile_r=8 -> 2 row tiles: exercises the parallel grid + per-tile loss partials.
    loss, pred = pipeline_forward(prepared, batch, future, tile_r=8)
    jax.block_until_ready((loss, pred))

    ref_loss, ref_pred = _reference_forward(params, batch, future)

    assert pred.shape == (B, FUT, VP)
    assert loss.shape == ()
    assert bool(jnp.isfinite(loss))
    assert jnp.allclose(pred.astype(jnp.float32), ref_pred, atol=5e-2, rtol=5e-2)
    assert jnp.allclose(loss, ref_loss, atol=5e-2, rtol=5e-2)
    print("KERNEL_OK")
</pallas_src>

<mosaic_0001>
module attributes {stable_mosaic.version = 11 : i64} {
  func.func @fused_pipeline_kernel(%arg0: i32, %arg1: memref<8x100xf32, #tpu.memory_space<vmem>>, %arg2: memref<100x256xbf16, #tpu.memory_space<vmem>>, %arg3: memref<1x256xf32, #tpu.memory_space<vmem>>, %arg4: memref<256x128xbf16, #tpu.memory_space<vmem>>, %arg5: memref<1x128xf32, #tpu.memory_space<vmem>>, %arg6: memref<8x128xbf16, #tpu.memory_space<vmem>>, %arg7: memref<1x8x100xf32, #tpu.memory_space<vmem>>) attributes {dimension_semantics = [#tpu.dimension_semantics<parallel>], iteration_bounds = array<i64: 2>, scalar_prefetch = 0 : i64, scratch_operands = 0 : i64, tpu.core_type = #tpu.core_type<tc>, window_params = [{transform_indices = @transform_0, window_bounds = array<i64: 8, 100>}, {pipeline_mode = #tpu.pipeline_mode<synchronous>, transform_indices = @transform_1, window_bounds = array<i64: 100, 256>}, {pipeline_mode = #tpu.pipeline_mode<synchronous>, transform_indices = @transform_2, window_bounds = array<i64: 1, 256>}, {pipeline_mode = #tpu.pipeline_mode<synchronous>, transform_indices = @transform_3, window_bounds = array<i64: 256, 128>}, {pipeline_mode = #tpu.pipeline_mode<synchronous>, transform_indices = @transform_4, window_bounds = array<i64: 1, 128>}, {transform_indices = @transform_5, window_bounds = array<i64: 8, 128>}, {transform_indices = @transform_6, window_bounds = array<i64: 1, 8, 100>}]} {
    %c0 = arith.constant 0 : index
    %c0_0 = arith.constant 0 : index
    %0 = vector.load %arg1[%c0, %c0_0] : memref<8x100xf32, #tpu.memory_space<vmem>>, vector<8x100xf32>
    %1 = arith.truncf %0 : vector<8x100xf32> to vector<8x100xbf16>
    %c0_1 = arith.constant 0 : index
    %c0_2 = arith.constant 0 : index
    %2 = vector.load %arg2[%c0_1, %c0_2] : memref<100x256xbf16, #tpu.memory_space<vmem>>, vector<100x256xbf16>
    %cst = arith.constant dense<0.000000e+00> : vector<8x256xf32>
    %3 = tpu.matmul %1, %2, %cst {dimension_numbers = #tpu.dot_dimension_numbers<[1], [0], [0], [1], [0, 0, 1, 1], [], []>} : vector<8x100xbf16>, vector<100x256xbf16>, vector<8x256xf32> -> vector<8x256xf32>
    %c0_3 = arith.constant 0 : index
    %c0_4 = arith.constant 0 : index
    %4 = vector.load %arg3[%c0_3, %c0_4] : memref<1x256xf32, #tpu.memory_space<vmem>>, vector<1x256xf32>
    %5 = vector.broadcast %4 : vector<1x256xf32> to vector<8x256xf32>
    %6 = arith.addf %3, %5 : vector<8x256xf32>
    %cst_5 = arith.constant dense<0.000000e+00> : vector<8xf32>
    %7 = vector.multi_reduction <add>, %6, %cst_5 [1] : vector<8x256xf32> to vector<8xf32>
    %8 = vector.shape_cast %7 : vector<8xf32> to vector<8x1xf32>
    %cst_6 = arith.constant 2.560000e+02 : f32
    %9 = vector.broadcast %cst_6 : f32 to vector<8x1xf32>
    %10 = arith.divf %8, %9 : vector<8x1xf32>
    %11 = vector.broadcast %10 : vector<8x1xf32> to vector<8x256xf32>
    %12 = arith.subf %6, %11 : vector<8x256xf32>
    %13 = arith.mulf %12, %12 : vector<8x256xf32>
    %cst_7 = arith.constant dense<0.000000e+00> : vector<8xf32>
    %14 = vector.multi_reduction <add>, %13, %cst_7 [1] : vector<8x256xf32> to vector<8xf32>
    %15 = vector.shape_cast %14 : vector<8xf32> to vector<8x1xf32>
    %cst_8 = arith.constant 2.560000e+02 : f32
    %16 = vector.broadcast %cst_8 : f32 to vector<8x1xf32>
    %17 = arith.divf %15, %16 : vector<8x1xf32>
    %18 = vector.broadcast %10 : vector<8x1xf32> to vector<8x256xf32>
    %19 = arith.subf %6, %18 : vector<8x256xf32>
    %cst_9 = arith.constant 9.99999974E-6 : f32
    %20 = vector.broadcast %cst_9 : f32 to vector<8x1xf32>
    %21 = arith.addf %17, %20 : vector<8x1xf32>
    %22 = math.rsqrt %21 : vector<8x1xf32>
    %23 = vector.broadcast %22 : vector<8x1xf32> to vector<8x256xf32>
    %24 = arith.mulf %19, %23 : vector<8x256xf32>
    %25 = arith.truncf %24 : vector<8x256xf32> to vector<8x256xbf16>
    %c0_10 = arith.constant 0 : index
    %c0_11 = arith.constant 0 : index
    %26 = vector.load %arg4[%c0_10, %c0_11] : memref<256x128xbf16, #tpu.memory_space<vmem>>, vector<256x128xbf16>
    %cst_12 = arith.constant dense<0.000000e+00> : vector<8x128xf32>
    %27 = tpu.matmul %25, %26, %cst_12 {dimension_numbers = #tpu.dot_dimension_numbers<[1], [0], [0], [1], [0, 0, 1, 1], [], []>} : vector<8x256xbf16>, vector<256x128xbf16>, vector<8x128xf32> -> vector<8x128xf32>
    %c0_13 = arith.constant 0 : index
    %c0_14 = arith.constant 0 : index
    %28 = vector.load %arg5[%c0_13, %c0_14] : memref<1x128xf32, #tpu.memory_space<vmem>>, vector<1x128xf32>
    %29 = vector.broadcast %28 : vector<1x128xf32> to vector<8x128xf32>
    %30 = arith.addf %27, %29 : vector<8x128xf32>
    %31 = arith.truncf %30 : vector<8x128xf32> to vector<8x128xbf16>
    %c0_15 = arith.constant 0 : index
    %c0_16 = arith.constant 0 : index
    %32 = vector.load %arg6[%c0_15, %c0_16] : memref<8x128xbf16, #tpu.memory_space<vmem>>, vector<8x128xbf16>
    tpu.vector_store %arg6[%c0_15, %c0_16], %31 {strides = array<i32>} : memref<8x128xbf16, #tpu.memory_space<vmem>>, vector<8x128xbf16>,
    %33 = vector.extract_strided_slice %30 {offsets = [0, 0], sizes = [8, 100], strides = [1, 1]} : vector<8x128xf32> to vector<8x100xf32>
    %34 = arith.subf %33, %0 : vector<8x100xf32>
    %35 = arith.mulf %34, %34 : vector<8x100xf32>
    %cst_17 = arith.constant dense<0.000000e+00> : vector<100xf32>
    %36 = vector.multi_reduction <add>, %35, %cst_17 [0] : vector<8x100xf32> to vector<100xf32>
    %37 = vector.shape_cast %36 : vector<100xf32> to vector<1x100xf32>
    %38 = vector.shape_cast %37 : vector<1x100xf32> to vector<1x100xf32>
    %39 = vector.broadcast %38 : vector<1x100xf32> to vector<8x100xf32>
    %c0_18 = arith.constant 0 : index
    %c0_19 = arith.constant 0 : index
    %c0_20 = arith.constant 0 : index
    %40 = vector.load %arg7[%c0_18, %c0_19, %c0_20] : memref<1x8x100xf32, #tpu.memory_space<vmem>>, vector<1x8x100xf32>
    %41 = vector.shape_cast %40 : vector<1x8x100xf32> to vector<8x100xf32>
    %42 = vector.shape_cast %39 : vector<8x100xf32> to vector<1x8x100xf32>
    tpu.vector_store %arg7[%c0_18, %c0_19, %c0_20], %42 {strides = array<i32>} : memref<1x8x100xf32, #tpu.memory_space<vmem>>, vector<1x8x100xf32>,
    return
  }
  func.func @transform_0(%arg0: i32) -> (i32, i32) {
    %c0_i32 = arith.constant 0 : i32
    %c0_i32_0 = arith.constant 0 : i32
    return %arg0, %c0_i32 : i32, i32
  }
  func.func @transform_1(%arg0: i32) -> (i32, i32) {
    %c0_i32 = arith.constant 0 : i32
    %c0_i32_0 = arith.constant 0 : i32
    %c0_i32_1 = arith.constant 0 : i32
    return %c0_i32, %c0_i32_0 : i32, i32
  }
  func.func @transform_2(%arg0: i32) -> (i32, i32) {
    %c0_i32 = arith.constant 0 : i32
    %c0_i32_0 = arith.constant 0 : i32
    %c0_i32_1 = arith.constant 0 : i32
    return %c0_i32, %c0_i32_0 : i32, i32
  }
  func.func @transform_3(%arg0: i32) -> (i32, i32) {
    %c0_i32 = arith.constant 0 : i32
    %c0_i32_0 = arith.constant 0 : i32
    %c0_i32_1 = arith.constant 0 : i32
    return %c0_i32, %c0_i32_0 : i32, i32
  }
  func.func @transform_4(%arg0: i32) -> (i32, i32) {
    %c0_i32 = arith.constant 0 : i32
    %c0_i32_0 = arith.constant 0 : i32
    %c0_i32_1 = arith.constant 0 : i32
    return %c0_i32, %c0_i32_0 : i32, i32
  }
  func.func @transform_5(%arg0: i32) -> (i32, i32) {
    %c0_i32 = arith.constant 0 : i32
    %c0_i32_0 = arith.constant 0 : i32
    return %arg0, %c0_i32 : i32, i32
  }
  func.func @transform_6(%arg0: i32) -> (i32, i32, i32) {
    %c0_i32 = arith.constant 0 : i32
    %c0_i32_0 = arith.constant 0 : i32
    %c0_i32_1 = arith.constant 0 : i32
    return %arg0, %c0_i32, %c0_i32_0 : i32, i32, i32
  }
}

</mosaic_0001>

<llo_original>
// kernel: tpu_custom_call.1
$region0: #{tpu_custom_call.1}
  #allocation0 [shape = 'u32[]', space=smem, size = 0x4, offset = 0x4, fixed_abs, tag = 'smem constant byte address 0x4 - core index']
  #allocation1 [shape = 'u32[72,128]{1,0:T(1,128)}', space=vmem, size = 0x9000, scoped, tag = 'internal scratch']
  %s0 = inlined_call_operand.hbm [shape: f32[16,100], index: 0, kind: input, shape index: {}]
  %s1 = inlined_call_operand.hbm [shape: bf16[100,256], index: 1, kind: input, shape index: {}]
  %s2 = inlined_call_operand.hbm [shape: f32[1,256], index: 2, kind: input, shape index: {}]
  %s3 = inlined_call_operand.hbm [shape: bf16[256,128], index: 3, kind: input, shape index: {}]
  %s4 = inlined_call_operand.vmem [shape: f32[1,128], index: 4, kind: input, shape index: {}]
  %s5 = inlined_call_operand.hbm [shape: bf16[16,128], index: 5, kind: output, shape index: {0}]
  %s6 = inlined_call_operand.hbm [shape: f32[2,8,100], index: 6, kind: output, shape index: {1}]
  %7 = xla_tuple %s5, %s6
  %s8 = sld [smem:[#allocation0]]
  $region77: #{tpu_custom_call.1} parent=0
    _
  %s10 = ssub.s32 1, %s8
  %s11 = scalar_select 0, %s10, %s8
  $region1: #{tpu_custom_call.1} parent=0
    #allocation2 [shape = 'u8[8192]{0}', space=vmem, size = 0x2000, scoped, tag = 'input window, operand 0']
    #allocation3 [shape = 's32[2]{0}', space=sflag, size = 0x8, scoped, tag = 'scoped memory for tpu_custom_call.1']
    #allocation4 [shape = 's32[2]{0}', space=sflag, size = 0x8, scoped, tag = 'scoped memory for tpu_custom_call.1']
    #allocation5 [shape = 'u8[53248]{0}', space=vmem, size = 0xd000, scoped, tag = 'input window, operand 1, single buffered']
    #allocation6 [shape = 's32[1]{0}', space=sflag, size = 0x4, scoped, tag = 'scoped memory for tpu_custom_call.1']
    #allocation7 [shape = 'u8[1024]{0}', space=vmem, size = 0x400, scoped, tag = 'input window, operand 2, single buffered']
    #allocation8 [shape = 'u8[65536]{0}', space=vmem, size = 0x10000, scoped, tag = 'input window, operand 3, single buffered']
    #allocation9 [shape = 's32[1]{0}', space=sflag, size = 0x4, scoped, tag = 'scoped memory for tpu_custom_call.1']
    #allocation10 [shape = 'u8[4096]{0}', space=vmem, size = 0x1000, scoped, tag = 'output window, operand 0']
    #allocation11 [shape = 'u8[8192]{0}', space=vmem, size = 0x2000, scoped, tag = 'output window, operand 1']
    #allocation12 [shape = 's32[2]{0}', space=sflag, size = 0x8, scoped, tag = 'scoped memory for tpu_custom_call.1']
    %12 = vsyncpa [#allocation3], 0
    %s13 = scalar_lea.sflag [#allocation3], 1
    %14 = vsyncpa %s13, 0
    %15 = vsyncpa [#allocation6], 0
    %16 = vsyncpa [#allocation9], 0
    %17 = vsyncpa [#allocation4], 0
    %s18 = scalar_lea.sflag [#allocation4], 1
    %19 = vsyncpa %s18, 0
    %20 = vsyncpa [#allocation12], 0
    %s21 = scalar_lea.sflag [#allocation12], 1
    %22 = vsyncpa %s21, 0
    loop: start=0, step=1, limit=4
    $region2: #{tpu_custom_call.1} parent=1 // loop_pre_header
      _
    $region3: #{tpu_custom_call.1} parent=1 // loop_header
      %s24 = sphi 0, %s28
      %p25 = scmp.ge.s32.totalorder %s24, 4
      %s34 = sphi 0, %s36
      %s37 = sphi 0, %s34
      %s38 = sphi 0, %s37
      %s54 = sphi 0, %s38
      %s58 = sphi 0, %s58
      %s60 = sphi 0, %s58
      %s61 = sphi 0, %s60
      %s75 = sphi 0, %s61
      %s79 = sphi 0, %s79
      %s81 = sphi 0, %s79
      %s82 = sphi 0, %s81
      %s96 = sphi 0, %s82
      %s100 = sphi 0, %s100
      %s102 = sphi 0, %s100
      %s103 = sphi 0, %s102
      %s117 = sphi 0, %s103
      %s121 = sphi 0, %s121
      %s123 = sphi 0, %s121
      %s124 = sphi 0, %s123
      %s138 = sphi 0, %s124
      %s144 = sphi 0, %s146
      %s147 = sphi 0, %s144
      %s148 = sphi 0, %s147
      %s164 = sphi 0, %s148
      %s170 = sphi 0, %s172
      %s173 = sphi 0, %s170
      %s174 = sphi 0, %s173
      %s190 = sphi 0, %s174
    $region4: #{tpu_custom_call.1} parent=1 // loop_header_branch
      %27 = sbr.rel (%p25) target = $region8
    $region5: #{tpu_custom_call.1} parent=1 // loop_body
      %s29 = ssub.s32 %s24, 1
      %s30 = ssub.s32 %s24, 2
      %s31 = sadd.s32 %s24, 1
      %s32 = ssub.s32 %s24, %s31
      %p33 = scmp.eq.s32.totalorder %s32, 0
      %s35 = sadd.s32 %s34, 1
      %s36 = scalar_select %p33, %s34, %s35
      %p39 = pneg %p33
      %p40 = scmp.eq.s32.totalorder %s24, 1
      %p41 = por %p39, %p40
      %p42 = scmp.ne.s32.totalorder %s34, %s37
      %p43 = scmp.eq.s32.totalorder %s24, 0
      %p44 = por %p42, %p43
      %p45 = scmp.ne.s32.totalorder %s34, %s37
      %p46 = scmp.eq.s32.totalorder %s29, 1
      %p47 = por %p45, %p46
      %p48 = scmp.ne.s32.totalorder %s37, %s38
      %p49 = scmp.eq.s32.totalorder %s29, 0
      %p50 = por %p48, %p49
      %p51 = scmp.ne.s32.totalorder %s37, %s38
      %p52 = scmp.eq.s32.totalorder %s30, 1
      %p53 = por %p51, %p52
      %p55 = scmp.ne.s32.totalorder %s38, %s54
      %p56 = scmp.eq.s32.totalorder %s30, 0
      %p57 = por %p55, %p56
      %s59 = sadd.s32 %s58, 1
      %p62 = scmp.eq.s32.totalorder %s24, 1
      %p63 = scmp.ne.s32.totalorder %s58, %s60
      %p64 = scmp.eq.s32.totalorder %s24, 0
      %p65 = por %p63, %p64
      %p66 = scmp.ne.s32.totalorder %s58, %s60
      %p67 = scmp.eq.s32.totalorder %s29, 1
      %p68 = por %p66, %p67
      %p69 = scmp.ne.s32.totalorder %s60, %s61
      %p70 = scmp.eq.s32.totalorder %s29, 0
      %p71 = por %p69, %p70
      %p72 = scmp.ne.s32.totalorder %s60, %s61
      %p73 = scmp.eq.s32.totalorder %s30, 1
      %p74 = por %p72, %p73
      %p76 = scmp.ne.s32.totalorder %s61, %s75
      %p77 = scmp.eq.s32.totalorder %s30, 0
      %p78 = por %p76, %p77
      %s80 = sadd.s32 %s79, 1
      %p83 = scmp.eq.s32.totalorder %s24, 1
      %p84 = scmp.ne.s32.totalorder %s79, %s81
      %p85 = scmp.eq.s32.totalorder %s24, 0
      %p86 = por %p84, %p85
      %p87 = scmp.ne.s32.totalorder %s79, %s81
      %p88 = scmp.eq.s32.totalorder %s29, 1
      %p89 = por %p87, %p88
      %p90 = scmp.ne.s32.totalorder %s81, %s82
      %p91 = scmp.eq.s32.totalorder %s29, 0
      %p92 = por %p90, %p91
      %p93 = scmp.ne.s32.totalorder %s81, %s82
      %p94 = scmp.eq.s32.totalorder %s30, 1
      %p95 = por %p93, %p94
      %p97 = scmp.ne.s32.totalorder %s82, %s96
      %p98 = scmp.eq.s32.totalorder %s30, 0
      %p99 = por %p97, %p98
      %s101 = sadd.s32 %s100, 1
      %p104 = scmp.eq.s32.totalorder %s24, 1
      %p105 = scmp.ne.s32.totalorder %s100, %s102
      %p106 = scmp.eq.s32.totalorder %s24, 0
      %p107 = por %p105, %p106
      %p108 = scmp.ne.s32.totalorder %s100, %s102
      %p109 = scmp.eq.s32.totalorder %s29, 1
      %p110 = por %p108, %p109
      %p111 = scmp.ne.s32.totalorder %s102, %s103
      %p112 = scmp.eq.s32.totalorder %s29, 0
      %p113 = por %p111, %p112
      %p114 = scmp.ne.s32.totalorder %s102, %s103
      %p115 = scmp.eq.s32.totalorder %s30, 1
      %p116 = por %p114, %p115
      %p118 = scmp.ne.s32.totalorder %s103, %s117
      %p119 = scmp.eq.s32.totalorder %s30, 0
      %p120 = por %p118, %p119
      %s122 = sadd.s32 %s121, 1
      %p125 = scmp.eq.s32.totalorder %s24, 1
      %p126 = scmp.ne.s32.totalorder %s121, %s123
      %p127 = scmp.eq.s32.totalorder %s24, 0
      %p128 = por %p126, %p127
      %p129 = scmp.ne.s32.totalorder %s121, %s123
      %p130 = scmp.eq.s32.totalorder %s29, 1
      %p131 = por %p129, %p130
      %p132 = scmp.ne.s32.totalorder %s123, %s124
      %p133 = scmp.eq.s32.totalorder %s29, 0
      %p134 = por %p132, %p133
      %p135 = scmp.ne.s32.totalorder %s123, %s124
      %p136 = scmp.eq.s32.totalorder %s30, 1
      %p137 = por %p135, %p136
      %p139 = scmp.ne.s32.totalorder %s124, %s138
      %p140 = scmp.eq.s32.totalorder %s30, 0
      %p141 = por %p139, %p140
      %s142 = ssub.s32 %s24, %s31
      %p143 = scmp.eq.s32.totalorder %s142, 0
      %s145 = sadd.s32 %s144, 1
      %s146 = scalar_select %p143, %s144, %s145
      %p149 = pneg %p143
      %p150 = scmp.eq.s32.totalorder %s24, 1
      %p151 = por %p149, %p150
      %p152 = scmp.ne.s32.totalorder %s144, %s147
      %p153 = scmp.eq.s32.totalorder %s24, 0
      %p154 = por %p152, %p153
      %p155 = scmp.ne.s32.totalorder %s144, %s147
      %p156 = scmp.eq.s32.totalorder %s29, 1
      %p157 = por %p155, %p156
      %p158 = scmp.ne.s32.totalorder %s147, %s148
      %p159 = scmp.eq.s32.totalorder %s29, 0
      %p160 = por %p158, %p159
      %p161 = scmp.ne.s32.totalorder %s147, %s148
      %p162 = scmp.eq.s32.totalorder %s30, 1
      %p163 = por %p161, %p162
      %p165 = scmp.ne.s32.totalorder %s148, %s164
      %p166 = scmp.eq.s32.totalorder %s30, 0
      %p167 = por %p165, %p166
      %s168 = ssub.s32 %s24, %s31
      %p169 = scmp.eq.s32.totalorder %s168, 0
      %s171 = sadd.s32 %s170, 1
      %s172 = scalar_select %p169, %s170, %s171
      %p175 = pneg %p169
      %p176 = scmp.eq.s32.totalorder %s24, 1
      %p177 = por %p175, %p176
      %p178 = scmp.ne.s32.totalorder %s170, %s173
      %p179 = scmp.eq.s32.totalorder %s24, 0
      %p180 = por %p178, %p179
      %p181 = scmp.ne.s32.totalorder %s170, %s173
      %p182 = scmp.eq.s32.totalorder %s29, 1
      %p183 = por %p181, %p182
      %p184 = scmp.ne.s32.totalorder %s173, %s174
      %p185 = scmp.eq.s32.totalorder %s29, 0
      %p186 = por %p184, %p185
      %p187 = scmp.ne.s32.totalorder %s173, %s174
      %p188 = scmp.eq.s32.totalorder %s30, 1
      %p189 = por %p187, %p188
      %p191 = scmp.ne.s32.totalorder %s174, %s190
      %p192 = scmp.eq.s32.totalorder %s30, 0
      %p193 = por %p191, %p192
      %p194 = scmp.le.s32.totalorder 1, %s24
      %p195 = scmp.lt.s32.totalorder %s24, 3
      %p196 = pnand %p194, %p195
      %p197 = pneg %p196
      // Predicated region
      $region9: #{tpu_custom_call.1} parent=5 // pred_check
        _
      $region10: #{tpu_custom_call.1} parent=5 // pred_check_branch
        %199 = sbr.rel (%p196) target = $region12
      $region11: #{tpu_custom_call.1} parent=5 // pred_region
        %s200 = ssub.s32 %s24, 1
        // Predicated region
        $region13: #{tpu_custom_call.1} parent=11 // pred_check
          %p201 = pneg %p71
        $region14: #{tpu_custom_call.1} parent=11 // pred_check_branch
          %203 = sbr.rel (%p201) target = $region16
        $region15: #{tpu_custom_call.1} parent=11 // pred_region
          %205 = vsyncadd [#allocation6], 0
          %s206 = sshll.u32 %s1, 4
          %s207 = int_to_ptr.hbm [resolvable:$true] %s206
          %s208 = sshll.u32 [#allocation5], 4
          %s209 = int_to_ptr.vmem [resolvable:$true] %s208
          %214 = dma.hbm_to_vmem [thread:$0]  %s207, 1664, %s209, [#allocation6], 128, 128, 8
        $region16: #{tpu_custom_call.1} parent=11 // pred_fallthru
          _
        // Predicated region
        $region17: #{tpu_custom_call.1} parent=11 // pred_check
          %p215 = pneg %p92
        $region18: #{tpu_custom_call.1} parent=11 // pred_check_branch
          %217 = sbr.rel (%p215) target = $region20
        $region19: #{tpu_custom_call.1} parent=11 // pred_region
          %219 = vsyncadd [#allocation6], 0
          %s221 = sshll.u32 %s2, 4
          %s222 = int_to_ptr.hbm [resolvable:$true] %s221
          %s223 = sshll.u32 [#allocation7], 4
          %s224 = int_to_ptr.vmem [resolvable:$true] %s223
          %226 = dma.hbm_to_vmem [thread:$0]  %s222, 32, %s224, [#allocation6]
        $region20: #{tpu_custom_call.1} parent=11 // pred_fallthru
          _
        // Predicated region
        $region21: #{tpu_custom_call.1} parent=11 // pred_check
          %p227 = pneg %p113
        $region22: #{tpu_custom_call.1} parent=11 // pred_check_branch
          %229 = sbr.rel (%p227) target = $region24
        $region23: #{tpu_custom_call.1} parent=11 // pred_region
          %231 = vsyncadd [#allocation9], 0
          %s232 = sshll.u32 %s3, 4
          %s233 = int_to_ptr.hbm [resolvable:$true] %s232
          %s234 = sshll.u32 [#allocation8], 4
          %s235 = int_to_ptr.vmem [resolvable:$true] %s234
          %240 = dma.hbm_to_vmem [thread:$0]  %s233, 2048, %s235, [#allocation9], 64, 64, 4
        $region24: #{tpu_custom_call.1} parent=11 // pred_fallthru
          _
        // Predicated region
        $region25: #{tpu_custom_call.1} parent=11 // pred_check
          %p241 = pneg %p134
        $region26: #{tpu_custom_call.1} parent=11 // pred_check_branch
          %243 = sbr.rel (%p241) target = $region28
        $region27: #{tpu_custom_call.1} parent=11 // pred_region
          _
        $region28: #{tpu_custom_call.1} parent=11 // pred_fallthru
          _
      $region12: #{tpu_custom_call.1} parent=5 // pred_fallthru
        _
      %p244 = scmp.lt.s32.totalorder %s24, 2
      // Predicated region
      $region29: #{tpu_custom_call.1} parent=5 // pred_check
        %p245 = pneg %p244
      $region30: #{tpu_custom_call.1} parent=5 // pred_check_branch
        %247 = sbr.rel (%p245) target = $region32
      $region31: #{tpu_custom_call.1} parent=5 // pred_region
        // Predicated region
        $region33: #{tpu_custom_call.1} parent=31 // pred_check
          %p248 = pneg %p44
        $region34: #{tpu_custom_call.1} parent=31 // pred_check_branch
          %250 = sbr.rel (%p248) target = $region36
        $region35: #{tpu_custom_call.1} parent=31 // pred_region
          %s251 = sand.u32 %s34, 1
          %s252 = scalar_lea.sflag [#allocation3], %s251
          %s253 = sand.u32 %s34, 1
          %s254 = smul.addr %s253, 8
          %s255 = scalar_lea.vmem [#allocation2], %s254
          %257 = vsyncadd %s252, 0
          %s258 = smul.addr %s24, 8
          %s259 = scalar_lea.hbm %s0, %s258
          %s261 = sshll.u32 %s259, 4
          %s262 = int_to_ptr.hbm [resolvable:$true] %s261
          %s263 = sshll.u32 %s255, 4
          %s264 = int_to_ptr.vmem [resolvable:$true] %s263
          %266 = dma.hbm_to_vmem [thread:$0]  %s262, 128, %s264, %s252
        $region36: #{tpu_custom_call.1} parent=31 // pred_fallthru
          _
      $region32: #{tpu_custom_call.1} parent=5 // pred_fallthru
        _
      %p267 = scmp.le.s32.totalorder 1, %s24
      %p268 = scmp.lt.s32.totalorder %s24, 3
      %p269 = pnand %p267, %p268
      %p270 = pneg %p269
      // Predicated region
      $region37: #{tpu_custom_call.1} parent=5 // pred_check
        _
      $region38: #{tpu_custom_call.1} parent=5 // pred_check_branch
        %272 = sbr.rel (%p269) target = $region40
      $region39: #{tpu_custom_call.1} parent=5 // pred_region
        %s273 = ssub.s32 %s24, 1
        %s274 = sand.u32 %s37, 1
        %s275 = scalar_lea.sflag [#allocation3], %s274
        %s276 = sand.u32 %s37, 1
        %s277 = smul.addr %s276, 8
        %s278 = scalar_lea.vmem [#allocation2], %s277
        // Predicated region
        $region41: #{tpu_custom_call.1} parent=39 // pred_check
          %p279 = pneg %p50
        $region42: #{tpu_custom_call.1} parent=39 // pred_check_branch
          %281 = sbr.rel (%p279) target = $region44
        $region43: #{tpu_custom_call.1} parent=39 // pred_region
          %283 = dma.done %s275, 128
        $region44: #{tpu_custom_call.1} parent=39 // pred_fallthru
          _
        // Predicated region
        $region45: #{tpu_custom_call.1} parent=39 // pred_check
          %p284 = pneg %p71
        $region46: #{tpu_custom_call.1} parent=39 // pred_check_branch
          %286 = sbr.rel (%p284) target = $region48
        $region47: #{tpu_custom_call.1} parent=39 // pred_region
          %288 = dma.done [#allocation6], 1664
        $region48: #{tpu_custom_call.1} parent=39 // pred_fallthru
          _
        // Predicated region
        $region49: #{tpu_custom_call.1} parent=39 // pred_check
          %p289 = pneg %p92
        $region50: #{tpu_custom_call.1} parent=39 // pred_check_branch
          %291 = sbr.rel (%p289) target = $region52
        $region51: #{tpu_custom_call.1} parent=39 // pred_region
          %293 = dma.done [#allocation6], 32
        $region52: #{tpu_custom_call.1} parent=39 // pred_fallthru
          _
        // Predicated region
        $region53: #{tpu_custom_call.1} parent=39 // pred_check
          %p294 = pneg %p113
        $region54: #{tpu_custom_call.1} parent=39 // pred_check_branch
          %296 = sbr.rel (%p294) target = $region56
        $region55: #{tpu_custom_call.1} parent=39 // pred_region
          %298 = dma.done [#allocation9], 2048
        $region56: #{tpu_custom_call.1} parent=39 // pred_fallthru
          _
        %s299 = sand.u32 %s37, 1
        %s300 = scalar_lea.sflag [#allocation3], %s299
        %s301 = sand.u32 %s37, 1
        %s302 = smul.addr %s301, 8
        %s303 = scalar_lea.vmem [#allocation2], %s302
        %p304 = pneg %p50
        %p305 = pneg %p47
        %p306 = pneg %p71
        %p307 = pneg %p68
        %p308 = pneg %p92
        %p309 = pneg %p89
        %p310 = pneg %p113
        %p311 = pneg %p110
        %p312 = pneg %p134
        %p313 = pneg %p131
        %p314 = pneg %p160
        %p315 = pneg %p157
        %s316 = sand.u32 %s147, 1
        %s317 = scalar_lea.sflag [#allocation4], %s316
        %s318 = sand.u32 %s147, 1
        %s319 = smul.addr %s318, 4
        %s320 = scalar_lea.vmem [#allocation10], %s319
        %p321 = pneg %p186
        %p322 = pneg %p183
        %s323 = sand.u32 %s173, 1
        %s324 = scalar_lea.sflag [#allocation12], %s323
        %s325 = sand.u32 %s173, 1
        %s326 = smul.addr %s325, 8
        %s327 = scalar_lea.vmem [#allocation11], %s326
        %v329 = vld [vmem:[%s278] sm:$0xff]
        %v330 = vpack.c.bf16 %v329, %v329
        %v331 = vld [vmem:[#allocation5] sm:$0xff]
        %v332 = vld [vmem:[#allocation5 + $0x8] sm:$0xff]
        %v333 = vld [vmem:[#allocation5 + $0x10] sm:$0xff]
        %v334 = vld [vmem:[#allocation5 + $0x18] sm:$0xff]
        %v335 = vld [vmem:[#allocation5 + $0x20] sm:$0xff]
        %v336 = vld [vmem:[#allocation5 + $0x28] sm:$0xff]
        %v337 = vld [vmem:[#allocation5 + $0x30] sm:$0xff]
        %v338 = vld [vmem:[#allocation5 + $0x38] sm:$0xff]
        %v339 = vld [vmem:[#allocation5 + $0x40] sm:$0xff]
        %v340 = vld [vmem:[#allocation5 + $0x48] sm:$0xff]
        %v341 = vld [vmem:[#allocation5 + $0x50] sm:$0xff]
        %v342 = vld [vmem:[#allocation5 + $0x58] sm:$0xff]
        %v343 = vld [vmem:[#allocation5 + $0x60] sm:$0x33]
        %v344 = vld [vmem:[#allocation7] sm:$0x3]
        %v346 = vperm.slane %v344, 0
        %v347 = vperm.slane %v344, 1
        %v363 = vunpack.c.l.b16 %v331
        %v364 = vunpack.c.h.b16 %v331
        %v365 = vunpack.c.l.b16 %v332
        %v366 = vunpack.c.h.b16 %v332
        %v367 = vunpack.c.l.b16 %v333
        %v368 = vunpack.c.h.b16 %v333
        %v369 = vunpack.c.l.b16 %v334
        %v370 = vunpack.c.h.b16 %v334
        %v371 = vunpack.c.l.b16 %v335
        %v372 = vunpack.c.h.b16 %v335
        %v373 = vunpack.c.l.b16 %v336
        %v374 = vunpack.c.h.b16 %v336
        %v375 = vunpack.c.l.b16 %v337
        %v376 = vunpack.c.h.b16 %v337
        %v377 = vunpack.c.l.b16 %v338
        %v378 = vunpack.c.h.b16 %v338
        %v379 = vunpack.c.l.b16 %v339
        %v380 = vunpack.c.h.b16 %v339
        %v381 = vunpack.c.l.b16 %v340
        %v382 = vunpack.c.h.b16 %v340
        %v383 = vunpack.c.l.b16 %v341
        %v384 = vunpack.c.h.b16 %v341
        %v385 = vunpack.c.l.b16 %v342
        %v386 = vunpack.c.h.b16 %v342
        %v387 = vunpack.c.l.b16 %v343
        %v388 = vunpack.c.h.b16 %v343
        %v389 = vpack.c.b16 %v365, %v363
        %v390 = vpack.c.b16 %v366, %v364
        %v391 = vpack.c.b16 %v369, %v367
        %v392 = vpack.c.b16 %v370, %v368
        %v393 = vpack.c.b16 %v373, %v371
        %v394 = vpack.c.b16 %v374, %v372
        %v395 = vpack.c.b16 %v377, %v375
        %v396 = vpack.c.b16 %v378, %v376
        %v397 = vpack.c.b16 %v381, %v379
        %v398 = vpack.c.b16 %v382, %v380
        %v399 = vpack.c.b16 %v385, %v383
        %v400 = vpack.c.b16 %v386, %v384
        %v401 = vpack.c.b16 %v387, %v387
        %v402 = vpack.c.b16 %v388, %v388
        %vm415 = vcmask 818176
        %v417 = vsel %vm415, %v330, 0
        %vm419 = vcmask 1041408
        %v421 = vsel %vm419, %v401, 0
        %v424 = vsel %vm419, %v402, 0
        %426 = vmatpush.bf16.msra.mxu0 0
        %427 = vmatpush.bf16.msra.mxu0 %v421
        %428 = vmatpush.bf16.msra.mxu0 %v399
        %429 = vmatpush.bf16.msra.mxu0 %v397
        %430 = vmatpush.bf16.msra.mxu0 %v395
        %431 = vmatpush.bf16.msra.mxu0 %v393
        %432 = vmatpush.bf16.msra.mxu0 %v391
        %433 = vmatpush.bf16.msra.mxu0 %v389
        %434 = vmatmul.bf16.gmra.mxu0 %v417
        %v435 = vpop.f32.mrf.mxu0
        %v436 = vadd.f32 %v346, %v435
        %v437 = vpop.f32.mrf.mxu0
        %438 = vdwg.mxu0
        %439 = vmatpush.bf16.msra.mxu0 0
        %440 = vmatpush.bf16.msra.mxu0 %v424
        %441 = vmatpush.bf16.msra.mxu0 %v400
        %442 = vmatpush.bf16.msra.mxu0 %v398
        %443 = vmatpush.bf16.msra.mxu0 %v396
        %444 = vmatpush.bf16.msra.mxu0 %v394
        %445 = vmatpush.bf16.msra.mxu0 %v392
        %446 = vmatpush.bf16.msra.mxu0 %v390
        %447 = vmatmul.bf16.gmra.mxu0 %v417
        %v448 = vpop.f32.mrf.mxu0
        %v449 = vadd.f32 %v347, %v448
        %v450 = vpop.f32.mrf.mxu0
        %451 = vdwg.mxu0
        %v452 = vadd.f32 %v436, %v449
        %453 = vadd.xlane.f32.xlu0 %v452
        %v454 = vpop.xlane.xlu0 %453
        %v455 = vrcp.pop 256.0
        %v456 = vmul.f32 256.0, %v455
        %v457 = vsub.f32 1.0, %v456
        %v458 = vmul.f32 %v455, %v457
        %v459 = vadd.f32 %v455, %v458
        %vm460 = vweird.f32 %v455
        %v461 = vsel %vm460, %v455, %v459
        %v462 = vmul.f32 %v454, %v461
        %v463 = vsub.f32 %v436, %v462
        %v464 = vsub.f32 %v449, %v462
        %v465 = vmul.f32 %v463, %v463
        %v466 = vmul.f32 %v464, %v464
        %v467 = vadd.f32 %v465, %v466
        %468 = vadd.xlane.f32.xlu0 %v467
        %v469 = vpop.xlane.xlu0 %468
        %v470 = vmul.f32 %v469, %v461
        %v471 = vadd.f32 %v470, 1e-05
        %v472 = vrsqrt.pop %v471
        %v473 = vmul.f32 %v472, %v471
        %v474 = vmul.f32 %v473, %v472
        %v475 = vmul.f32 0.5, %v474
        %v476 = vsub.f32 1.5, %v475
        %v477 = vmul.f32 %v472, %v476
        %vm478 = vweird.f32 %v471
        %vm479 = vweird.f32 %v472
        %vm480 = vmor %vm478, %vm479
        %v481 = vsel %vm480, %v472, %v477
        %v482 = vmul.f32 %v463, %v481
        %v483 = vmul.f32 %v464, %v481
        %v484 = vpack.c.bf16 %v482, %v482
        %v485 = vpack.c.bf16 %v483, %v483
        %v486 = vld [vmem:[#allocation8] sm:$0xf]
        %v487 = vld [vmem:[#allocation8 + $0x4] sm:$0xf]
        %v488 = vld [vmem:[#allocation8 + $0x8] sm:$0xf]
        %v489 = vld [vmem:[#allocation8 + $0xc] sm:$0xf]
        %v490 = vld [vmem:[#allocation8 + $0x10] sm:$0xf]
        %v491 = vld [vmem:[#allocation8 + $0x14] sm:$0xf]
        %v492 = vld [vmem:[#allocation8 + $0x18] sm:$0xf]
        %v493 = vld [vmem:[#allocation8 + $0x1c] sm:$0xf]
        %v494 = vld [vmem:[#allocation8 + $0x20] sm:$0xf]
        %v495 = vld [vmem:[#allocation8 + $0x24] sm:$0xf]
        %v496 = vld [vmem:[#allocation8 + $0x28] sm:$0xf]
        %v497 = vld [vmem:[#allocation8 + $0x2c] sm:$0xf]
        %v498 = vld [vmem:[#allocation8 + $0x30] sm:$0xf]
        %v499 = vld [vmem:[#allocation8 + $0x34] sm:$0xf]
        %v500 = vld [vmem:[#allocation8 + $0x38] sm:$0xf]
        %v501 = vld [vmem:[#allocation8 + $0x3c] sm:$0xf]
        %v502 = vld [vmem:[#allocation8 + $0x40] sm:$0xf]
        %v503 = vld [vmem:[#allocation8 + $0x44] sm:$0xf]
        %v504 = vld [vmem:[#allocation8 + $0x48] sm:$0xf]
        %v505 = vld [vmem:[#allocation8 + $0x4c] sm:$0xf]
        %v506 = vld [vmem:[#allocation8 + $0x50] sm:$0xf]
        %v507 = vld [vmem:[#allocation8 + $0x54] sm:$0xf]
        %v508 = vld [vmem:[#allocation8 + $0x58] sm:$0xf]
        %v509 = vld [vmem:[#allocation8 + $0x5c] sm:$0xf]
        %v510 = vld [vmem:[#allocation8 + $0x60] sm:$0xf]
        %v511 = vld [vmem:[#allocation8 + $0x64] sm:$0xf]
        %v512 = vld [vmem:[#allocation8 + $0x68] sm:$0xf]
        %v513 = vld [vmem:[#allocation8 + $0x6c] sm:$0xf]
        %v514 = vld [vmem:[#allocation8 + $0x70] sm:$0xf]
        %v515 = vld [vmem:[#allocation8 + $0x74] sm:$0xf]
        %v516 = vld [vmem:[#allocation8 + $0x78] sm:$0xf]
        %v517 = vld [vmem:[#allocation8 + $0x7c] sm:$0xf]
        %v518 = vld [vmem:[%s4] sm:$0x1]
        %v520 = vperm.slane %v518, 0
        %v554 = vunpack.c.l.b16 %v486
        %v555 = vunpack.c.l.b16 %v487
        %v556 = vunpack.c.l.b16 %v488
        %v557 = vunpack.c.l.b16 %v489
        %v558 = vunpack.c.l.b16 %v490
        %v559 = vunpack.c.l.b16 %v491
        %v560 = vunpack.c.l.b16 %v492
        %v561 = vunpack.c.l.b16 %v493
        %v562 = vunpack.c.l.b16 %v494
        %v563 = vunpack.c.l.b16 %v495
        %v564 = vunpack.c.l.b16 %v496
        %v565 = vunpack.c.l.b16 %v497
        %v566 = vunpack.c.l.b16 %v498
        %v567 = vunpack.c.l.b16 %v499
        %v568 = vunpack.c.l.b16 %v500
        %v569 = vunpack.c.l.b16 %v501
        %v570 = vunpack.c.l.b16 %v502
        %v571 = vunpack.c.l.b16 %v503
        %v572 = vunpack.c.l.b16 %v504
        %v573 = vunpack.c.l.b16 %v505
        %v574 = vunpack.c.l.b16 %v506
        %v575 = vunpack.c.l.b16 %v507
        %v576 = vunpack.c.l.b16 %v508
        %v577 = vunpack.c.l.b16 %v509
        %v578 = vunpack.c.l.b16 %v510
        %v579 = vunpack.c.l.b16 %v511
        %v580 = vunpack.c.l.b16 %v512
        %v581 = vunpack.c.l.b16 %v513
        %v582 = vunpack.c.l.b16 %v514
        %v583 = vunpack.c.l.b16 %v515
        %v584 = vunpack.c.l.b16 %v516
        %v585 = vunpack.c.l.b16 %v517
        %v586 = vpack.c.b16 %v555, %v554
        %v587 = vpack.c.b16 %v557, %v556
        %v588 = vpack.c.b16 %v559, %v558
        %v589 = vpack.c.b16 %v561, %v560
        %v590 = vpack.c.b16 %v563, %v562
        %v591 = vpack.c.b16 %v565, %v564
        %v592 = vpack.c.b16 %v567, %v566
        %v593 = vpack.c.b16 %v569, %v568
        %v594 = vpack.c.b16 %v571, %v570
        %v595 = vpack.c.b16 %v573, %v572
        %v596 = vpack.c.b16 %v575, %v574
        %v597 = vpack.c.b16 %v577, %v576
        %v598 = vpack.c.b16 %v579, %v578
        %v599 = vpack.c.b16 %v581, %v580
        %v600 = vpack.c.b16 %v583, %v582
        %v601 = vpack.c.b16 %v585, %v584
        %618 = vmatpush.bf16.msra.mxu0 %v593
        %619 = vmatpush.bf16.msra.mxu0 %v592
        %620 = vmatpush.bf16.msra.mxu0 %v591
        %621 = vmatpush.bf16.msra.mxu0 %v590
        %622 = vmatpush.bf16.msra.mxu0 %v589
        %623 = vmatpush.bf16.msra.mxu0 %v588
        %624 = vmatpush.bf16.msra.mxu0 %v587
        %625 = vmatpush.bf16.msra.mxu0 %v586
        %626 = vmatmul.bf16.gmra.mxu0 %v484
        %v627 = vpop.f32.mrf.mxu0
        %v628 = vadd.f32 %v520, %v627
        %v629 = vpop.f32.mrf.mxu0
        %630 = vdwg.mxu0
        %631 = vmatpush.bf16.msra.mxu0 %v601
        %632 = vmatpush.bf16.msra.mxu0 %v600
        %633 = vmatpush.bf16.msra.mxu0 %v599
        %634 = vmatpush.bf16.msra.mxu0 %v598
        %635 = vmatpush.bf16.msra.mxu0 %v597
        %636 = vmatpush.bf16.msra.mxu0 %v596
        %637 = vmatpush.bf16.msra.mxu0 %v595
        %638 = vmatpush.bf16.msra.mxu0 %v594
        %639 = vmatmul.bf16.gmra.mxu0 %v485
        %v640 = vpop.f32.mrf.mxu0
        %v641 = vadd.f32 %v628, %v640
        %v642 = vpop.f32.mrf.mxu0
        %643 = vdwg.mxu0
        %v644 = vpack.c.bf16 %v641, %v641
        %645 = vst [vmem:[%s320] sm:$0xf] %v644
        %v646 = vsub.f32 %v641, %v329
        %v647 = vmul.f32 %v646, %v646
        %v648 = vsel %vm415, %v647, 0.0
        %v649 = vrot.slane %v648, 4
        %v650 = vadd.f32 %v648, %v649
        %v651 = vrot.slane %v650, 2
        %v652 = vadd.f32 %v650, %v651
        %v653 = vrot.slane %v652, 1
        %v654 = vadd.f32 %v652, %v653
        %655 = vst.msk [vmem:[%s327] sm:$0xff] %vm415, %v654
        %s656 = sand.u32 %s147, 1
        %s657 = scalar_lea.sflag [#allocation4], %s656
        %s658 = sand.u32 %s147, 1
        %s659 = smul.addr %s658, 4
        %s660 = scalar_lea.vmem [#allocation10], %s659
        %s661 = sand.u32 %s173, 1
        %s662 = scalar_lea.sflag [#allocation12], %s661
        %s663 = sand.u32 %s173, 1
        %s664 = smul.addr %s663, 8
        %s665 = scalar_lea.vmem [#allocation11], %s664
        // Predicated region
        $region57: #{tpu_custom_call.1} parent=39 // pred_check
          %p666 = pneg %p157
        $region58: #{tpu_custom_call.1} parent=39 // pred_check_branch
          %668 = sbr.rel (%p666) target = $region60
        $region59: #{tpu_custom_call.1} parent=39 // pred_region
          %670 = vsyncadd %s657, 0
          %s671 = smul.addr %s29, 4
          %s672 = scalar_lea.hbm %s5, %s671
          %s674 = sshll.u32 %s660, 4
          %s675 = int_to_ptr.vmem [resolvable:$true] %s674
          %s676 = sshll.u32 %s672, 4
          %s677 = int_to_ptr.hbm [resolvable:$true] %s676
          %679 = dma.vmem_to_hbm [thread:$0]  %s675, 64, %s677, %s657
        $region60: #{tpu_custom_call.1} parent=39 // pred_fallthru
          _
        // Predicated region
        $region61: #{tpu_custom_call.1} parent=39 // pred_check
          %p680 = pneg %p183
        $region62: #{tpu_custom_call.1} parent=39 // pred_check_branch
          %682 = sbr.rel (%p680) target = $region64
        $region63: #{tpu_custom_call.1} parent=39 // pred_region
          %684 = vsyncadd %s662, 0
          %s685 = smul.addr %s29, 8
          %s686 = scalar_lea.hbm %s6, %s685
          %s688 = sshll.u32 %s665, 4
          %s689 = int_to_ptr.vmem [resolvable:$true] %s688
          %s690 = sshll.u32 %s686, 4
          %s691 = int_to_ptr.hbm [resolvable:$true] %s690
          %693 = dma.vmem_to_hbm [thread:$0]  %s689, 128, %s691, %s662
        $region64: #{tpu_custom_call.1} parent=39 // pred_fallthru
          _
      $region40: #{tpu_custom_call.1} parent=5 // pred_fallthru
        _
      %p694 = scmp.le.s32.totalorder 2, %s24
      // Predicated region
      $region65: #{tpu_custom_call.1} parent=5 // pred_check
        %p695 = pneg %p694
      $region66: #{tpu_custom_call.1} parent=5 // pred_check_branch
        %697 = sbr.rel (%p695) target = $region68
      $region67: #{tpu_custom_call.1} parent=5 // pred_region
        %s698 = ssub.s32 %s24, 2
        // Predicated region
        $region69: #{tpu_custom_call.1} parent=67 // pred_check
          %p699 = pneg %p163
        $region70: #{tpu_custom_call.1} parent=67 // pred_check_branch
          %701 = sbr.rel (%p699) target = $region72
        $region71: #{tpu_custom_call.1} parent=67 // pred_region
          %s702 = sand.u32 %s148, 1
          %s703 = scalar_lea.sflag [#allocation4], %s702
          %s704 = sand.u32 %s148, 1
          %s705 = smul.addr %s704, 4
          %s706 = scalar_lea.vmem [#allocation10], %s705
          %708 = dma.done %s703, 64
        $region72: #{tpu_custom_call.1} parent=67 // pred_fallthru
          _
        // Predicated region
        $region73: #{tpu_custom_call.1} parent=67 // pred_check
          %p709 = pneg %p189
        $region74: #{tpu_custom_call.1} parent=67 // pred_check_branch
          %711 = sbr.rel (%p709) target = $region76
        $region75: #{tpu_custom_call.1} parent=67 // pred_region
          %s712 = sand.u32 %s174, 1
          %s713 = scalar_lea.sflag [#allocation12], %s712
          %s714 = sand.u32 %s174, 1
          %s715 = smul.addr %s714, 8
          %s716 = scalar_lea.vmem [#allocation11], %s715
          %718 = dma.done %s713, 128
        $region76: #{tpu_custom_call.1} parent=67 // pred_fallthru
          _
      $region68: #{tpu_custom_call.1} parent=5 // pred_fallthru
        _
    $region6: #{tpu_custom_call.1} parent=1 // loop_footer
      %s28 = sadd.s32 1, %s24
    $region7: #{tpu_custom_call.1} parent=1 // loop_footer_branch
      %23 = sbr.rel target = $region3
    $region8: #{tpu_custom_call.1} parent=1 // loop_exit
      _
    %719 = vsyncpa [#allocation3], 1
    %s720 = scalar_lea.sflag [#allocation3], 1
    %721 = vsyncpa %s720, 1
    %722 = vsyncpa [#allocation6], 1
    %723 = vsyncpa [#allocation9], 1
    %724 = vsyncpa [#allocation4], 1
    %s725 = scalar_lea.sflag [#allocation4], 1
    %726 = vsyncpa %s725, 1
    %727 = vsyncpa [#allocation12], 1
    %s728 = scalar_lea.sflag [#allocation12], 1
    %729 = vsyncpa %s728, 1

</llo_original>
